<compile_context>
chip_gen: v7x
topology: tpu7x:2x2x1
jax: 0.10.0
libtpu: 0.0.40
codegen_flags: <defaults>
</compile_context>

<pallas_src>
import functools

import jax
import jax.numpy as jnp
import numpy as np
from jax.experimental import pallas as pl
from jax.experimental.pallas import tpu as pltpu

TAU = 0.5
CLUSTER_NUM = 10
MULTIPLIER = 2  # contrast_count / anchor_count


def _round_up(x, m):
    return ((x + m - 1) // m) * m


def _instance_loss_kernel(anchor_ref, pair_ref, ft_ref, lab_row_ref, lab_col_ref,
                          out_ref, *, n_real, n_half, tq, tau,
                          mask_pad_cols, lane_dense_out):
    m = 2 * n_half
    inv_tau = jnp.float32(1.0 / tau)
    r0 = pl.program_id(0) * tq                                 # first global row of tile

    a_bf = anchor_ref[...]                                     # (tq, d_pad) bf16 anchors

    # similarity slab: (tq, d_pad) @ (d_pad, m) on the MXU, f32 accumulate.
    s = jnp.dot(a_bf, ft_ref[...], preferred_element_type=jnp.float32) * inv_tau

    # masks from 1-D row/col index & label vectors (no (m, m) iotas, no modulo).
    jj = jax.lax.broadcasted_iota(jnp.int32, (1, m), 1)        # global col index
    ii = r0 + jax.lax.broadcasted_iota(jnp.int32, (tq, 1), 0)  # global row index
    jmod = jnp.where(jj >= n_half, jj - n_half, jj)            # j % n_half
    imod = jnp.where(ii >= n_half, ii - n_half, ii)            # i % n_half

    lab_r = lab_row_ref[...]                                   # (1, m)  int32, invalid -> -1
    lab_c = lab_col_ref[...]                                   # (tq, 1) int32, invalid -> -2

    same_sample = imod == jmod                                 # repeated eye(n_half)
    diag = ii == jj                                            # eye(m) slice
    # Sentinel labels: an invalid row label (-2) can never equal any column label
    # (valid >= 0 or -1), so the two `!= -1` compares + ANDs are unnecessary.
    pos_lab = (lab_c == lab_r) & (~same_sample)
    keep = (~diag) & (~pos_lab)                                # == logits_mask (bool)
    if mask_pad_cols:                                          # static: only when rows padded
        keep = keep & (jmod < n_real)

    # Any row-wise stabilizer cancels in the loss; max over all columns is safe
    # (padded columns only add candidates, never reduce the max).
    row_max = jnp.max(s, axis=1, keepdims=True)                # (tq, 1)
    denom = jnp.sum(jnp.where(keep, jnp.exp(s - row_max), 0.0),
                    axis=1, keepdims=True)                     # (tq, 1), always > 0

    # numerator: the single positive per row (other view of the same sample) —
    # VPU multiply + XLU reduce over d; the mask_eye row-sum is exactly 1, so no divide.
    pair_dot = jnp.sum(a_bf.astype(jnp.float32) * pair_ref[...].astype(jnp.float32),
                       axis=1, keepdims=True) * inv_tau        # (tq, 1)

    loss = -((pair_dot - row_max) - jnp.log(denom))            # (tq, 1) per-row loss
    if lane_dense_out:
        out_ref[...] = loss.reshape(1, tq)                     # lane-dense store
    else:
        out_ref[...] = loss                                    # (tq, 1) column store


def _vmem_plan():
    """Generation-aware (tile budget, vmem_limit_bytes)."""
    cap = None
    try:
        info = pltpu.get_tpu_info()
        cap = int(getattr(info, "vmem_capacity_bytes", 0)) or None
    except Exception:
        cap = None
    if cap is None:
        cap = 64 << 20                       # conservative (v7x-sized) fallback
    cap = min(max(cap, 32 << 20), 256 << 20)
    vmem_limit = max(32 << 20, cap - (16 << 20))     # 112 MiB on v5e/v6e, 48 MiB on v7x
    tile_budget = max(24 << 20, vmem_limit - (8 << 20))  # 104 MiB / 40 MiB
    return tile_budget, vmem_limit


def _choose_row_tile(n, d_pad, budget_bytes):
    """Largest TQ (multiple of 8, <= round_up(n,8)) whose working set fits the budget.

    No divisor requirement on n: rows are padded per half to a multiple of TQ.
    Resident inputs are budgeted double-buffered (conservative w.r.t. the
    Buffered(1) request) so the fallback path also fits.
    """
    cap = _round_up(max(n, 8), 8)
    for tq in (512, 256, 128, 64, 32, 16, 8):
        if tq > cap:
            continue
        n_pad = _round_up(n, tq)
        m = 2 * n_pad
        resident = 2 * (m * d_pad * 2) + 2 * (m * 4)     # bf16 RHS + label row (x2 buffers)
        slab = 6 * tq * m * 4                            # ~6 live (tq, m) f32-equivalent temps
        tiles = 4 * (tq * d_pad * 2) + 4 * (tq * 128 * 4)  # anchor/pair/out/label tiles (2x buf)
        if resident + slab + tiles <= budget_bytes:
            return tq, n_pad
    return 8, _round_up(n, 8)


def instance_loss_boost_forward(z_i, z_j, pseudo_label, *, tau=TAU):
    """Pallas implementation of InstanceLossBoost.forward (returns scalar loss)."""
    n, d = z_i.shape
    assert z_j.shape == (n, d)
    assert pseudo_label.shape == (n,)

    d_pad = max(_round_up(d, 128), 128)                 # lane-pad features (zeros are inert)
    tile_budget, vmem_limit = _vmem_plan()
    tq, n_pad = _choose_row_tile(n, d_pad, tile_budget)
    m_pad = 2 * n_pad
    nb = n_pad // tq                                    # blocks per half
    grid = m_pad // tq

    def pad_rows(x):
        if n_pad == n and d_pad == d:
            return x
        return jnp.pad(x, ((0, n_pad - n), (0, d_pad - d)))

    # bf16 features: halve feature DMA bytes, 2x MXU throughput; f32 accumulate in-kernel.
    zi = pad_rows(z_i.astype(jnp.bfloat16))
    zj = pad_rows(z_j.astype(jnp.bfloat16))
    feats = jnp.concatenate([zi, zj], axis=0)           # (m_pad, d_pad) anchors
    feats_t = feats.T                                   # (d_pad, m_pad) NN-form RHS

    lab = pseudo_label.astype(jnp.int32)
    lab_p = jnp.pad(lab, (0, n_pad - n), constant_values=-1) if n_pad != n else lab
    lab2 = jnp.concatenate([lab_p, lab_p], axis=0)
    invalid = lab2 < 0
    # Sentinel encoding (review item): invalid columns -> -1, invalid rows -> -2.
    lab_row = jnp.where(invalid, -1, lab2).reshape(1, m_pad)
    lab_col = jnp.where(invalid, -2, lab2).reshape(m_pad, 1)

    kernel_common = dict(n_real=n, n_half=n_pad, tq=tq, tau=float(tau),
                         mask_pad_cols=(n_pad != n))

    def run(fancy):
        kernel = functools.partial(_instance_loss_kernel, lane_dense_out=fancy,
                                   **kernel_common)
        resident_kw = dict(pipeline_mode=pl.Buffered(1)) if fancy else {}
        if fancy:
            out_shape = jax.ShapeDtypeStruct((grid, tq), jnp.float32)
            out_spec = pl.BlockSpec((1, tq), lambda t: (t, 0))      # lane-dense rows
        else:
            out_shape = jax.ShapeDtypeStruct((m_pad, 1), jnp.float32)
            out_spec = pl.BlockSpec((tq, 1), lambda t: (t, 0))
        per_row = pl.pallas_call(
            kernel,
            out_shape=out_shape,
            grid_spec=pltpu.PrefetchScalarGridSpec(
                num_scalar_prefetch=0,
                grid=(grid,),
                in_specs=[
                    pl.BlockSpec((tq, d_pad), lambda t: (t, 0)),                    # anchor tile
                    pl.BlockSpec((tq, d_pad), lambda t: ((t + nb) % (2 * nb), 0)),  # paired-view tile
                    pl.BlockSpec((d_pad, m_pad), lambda t: (0, 0), **resident_kw),  # resident RHS
                    pl.BlockSpec((1, m_pad), lambda t: (0, 0), **resident_kw),      # labels (cols)
                    pl.BlockSpec((tq, 1), lambda t: (t, 0)),                        # labels (rows)
                ],
                out_specs=out_spec,
            ),
            compiler_params=pltpu.CompilerParams(
                dimension_semantics=("parallel",),   # disjoint outputs -> megacore-safe on v7x
                vmem_limit_bytes=int(vmem_limit),    # generation-aware explicit limit
            ),
        )(feats, feats, feats_t, lab_row, lab_col)
        return jax.block_until_ready(per_row).reshape(m_pad)

    try:
        per_row = run(fancy=True)
    except Exception:
        # Graceful degradation if Buffered(1) / the (1, tq) out block is rejected
        # by the installed Pallas: identical math, previously-validated layout.
        per_row = run(fancy=False)

    # Mean over real rows only (padded rows are excluded, padded cols were masked).
    loss_sum = jnp.sum(per_row[:n]) + jnp.sum(per_row[n_pad:n_pad + n])
    return loss_sum / jnp.float32(2 * n)


def _reference_forward(z_i, z_j, pseudo_label, *, tau=TAU):
    """Pure-JAX transcription of the PyTorch forward (for verification)."""
    n = z_i.shape[0]
    invalid = pseudo_label == -1
    mask = (pseudo_label[:, None] == pseudo_label[None, :])
    mask = mask & (~invalid[:, None]) & (~invalid[None, :])
    mask = mask & (~jnp.eye(n, dtype=bool))
    mask = mask.astype(jnp.float32)
    mask_eye = jnp.eye(n, dtype=jnp.float32)

    f = jnp.concatenate([z_i, z_j], axis=0).astype(jnp.float32)
    s = (f @ f.T) / tau
    s = s - jnp.max(s, axis=1, keepdims=True)

    mask_rep = jnp.tile(mask, (MULTIPLIER, MULTIPLIER))
    mask_eye_rep = jnp.tile(mask_eye, (MULTIPLIER, MULTIPLIER))
    m = MULTIPLIER * n
    logits_mask = 1.0 - jnp.eye(m, dtype=jnp.float32)
    logits_mask = logits_mask * (1.0 - mask_rep)
    mask_eye_rep = mask_eye_rep * logits_mask

    exp_logits = jnp.exp(s) * logits_mask
    log_prob = s - jnp.log(jnp.sum(exp_logits, axis=1, keepdims=True))
    mean_log_prob_pos = jnp.sum(mask_eye_rep * log_prob, axis=1) / jnp.sum(
        mask_eye_rep, axis=1
    )
    return jnp.mean(-mean_log_prob_pos)


if __name__ == "__main__":
    # TODO(synk): generate_pseudo_labels (per-class top-k with data-dependent
    # Python loops, @torch.no_grad bookkeeping) is host-side label management,
    # not part of the forward hot path — not ported.
    key = jax.random.PRNGKey(0)

    def check(n, d, note):
        k1, k2, k3 = jax.random.split(jax.random.fold_in(key, n * 1000 + d), 3)
        z_i = jax.random.normal(k1, (n, d), dtype=jnp.float32)
        z_j = jax.random.normal(k2, (n, d), dtype=jnp.float32)
        lab = jax.random.randint(k3, (n,), 0, CLUSTER_NUM, dtype=jnp.int32)
        lab = lab.at[1].set(-1).at[n - 3].set(-1)

        loss = jax.block_until_ready(instance_loss_boost_forward(z_i, z_j, lab))

        # Reference with the same bf16 feature rounding the kernel uses (tight) ...
        zi_r = z_i.astype(jnp.bfloat16).astype(jnp.float32)
        zj_r = z_j.astype(jnp.bfloat16).astype(jnp.float32)
        ref_bf = jax.block_until_ready(_reference_forward(zi_r, zj_r, lab))
        # ... and full-f32 reference (bounds bf16 quantization error).
        ref_f32 = jax.block_until_ready(_reference_forward(z_i, z_j, lab))

        assert np.allclose(np.asarray(loss), np.asarray(ref_bf), rtol=2e-3, atol=2e-3), (
            note, loss, ref_bf)
        assert np.allclose(np.asarray(loss), np.asarray(ref_f32), rtol=5e-2, atol=5e-2), (
            note, loss, ref_f32)

    check(8, 32, "aligned")   # batch=8, hidden=32 (no padding path)
    check(12, 40, "padded")   # exercises row padding (n not mult. of TQ) + d->128 padding
    print("KERNEL_OK")
</pallas_src>

<mosaic_0001>
module attributes {stable_mosaic.version = 11 : i64} {
  func.func @_instance_loss_kernel(%arg0: i32, %arg1: memref<8x128xbf16, #tpu.memory_space<vmem>>, %arg2: memref<8x128xbf16, #tpu.memory_space<vmem>>, %arg3: memref<128x16xbf16, #tpu.memory_space<vmem>>, %arg4: memref<1x16xi32, #tpu.memory_space<vmem>>, %arg5: memref<8x1xi32, #tpu.memory_space<vmem>>, %arg6: memref<8x1xf32, #tpu.memory_space<vmem>>) attributes {dimension_semantics = [#tpu.dimension_semantics<parallel>], iteration_bounds = array<i64: 2>, scalar_prefetch = 0 : i64, scratch_operands = 0 : i64, tpu.core_type = #tpu.core_type<tc>, window_params = [{transform_indices = @transform_0, window_bounds = array<i64: 8, 128>}, {transform_indices = @transform_1, window_bounds = array<i64: 8, 128>}, {pipeline_mode = #tpu.pipeline_mode<synchronous>, transform_indices = @transform_2, window_bounds = array<i64: 128, 16>}, {pipeline_mode = #tpu.pipeline_mode<synchronous>, transform_indices = @transform_3, window_bounds = array<i64: 1, 16>}, {transform_indices = @transform_4, window_bounds = array<i64: 8, 1>}, {transform_indices = @transform_5, window_bounds = array<i64: 8, 1>}]} {
    %c8_i32 = arith.constant 8 : i32
    %0 = arith.muli %arg0, %c8_i32 : i32
    %c0 = arith.constant 0 : index
    %c0_0 = arith.constant 0 : index
    %1 = vector.load %arg1[%c0, %c0_0] : memref<8x128xbf16, #tpu.memory_space<vmem>>, vector<8x128xbf16>
    %c0_1 = arith.constant 0 : index
    %c0_2 = arith.constant 0 : index
    %2 = vector.load %arg3[%c0_1, %c0_2] : memref<128x16xbf16, #tpu.memory_space<vmem>>, vector<128x16xbf16>
    %cst = arith.constant dense<0.000000e+00> : vector<8x16xf32>
    %3 = tpu.matmul %1, %2, %cst {dimension_numbers = #tpu.dot_dimension_numbers<[1], [0], [0], [1], [0, 0, 1, 1], [], []>} : vector<8x128xbf16>, vector<128x16xbf16>, vector<8x16xf32> -> vector<8x16xf32>
    %cst_3 = arith.constant 2.000000e+00 : f32
    %4 = vector.broadcast %cst_3 : f32 to vector<8x16xf32>
    %5 = arith.mulf %3, %4 : vector<8x16xf32>
    %6 = tpu.iota {dimensions = array<i32: 1>} : vector<1x16xi32>
    %7 = tpu.iota {dimensions = array<i32: 0>} : vector<8x1xi32>
    %8 = vector.broadcast %0 : i32 to vector<8x1xi32>
    %9 = arith.addi %8, %7 : vector<8x1xi32>
    %c8_i32_4 = arith.constant 8 : i32
    %10 = vector.broadcast %c8_i32_4 : i32 to vector<1x16xi32>
    %11 = arith.cmpi sge, %6, %10 : vector<1x16xi32>
    %c8_i32_5 = arith.constant 8 : i32
    %12 = vector.broadcast %c8_i32_5 : i32 to vector<1x16xi32>
    %13 = arith.subi %6, %12 : vector<1x16xi32>
    %14 = arith.select %11, %13, %6 : vector<1x16xi1>, vector<1x16xi32>
    %c8_i32_6 = arith.constant 8 : i32
    %15 = vector.broadcast %c8_i32_6 : i32 to vector<8x1xi32>
    %16 = arith.cmpi sge, %9, %15 : vector<8x1xi32>
    %c8_i32_7 = arith.constant 8 : i32
    %17 = vector.broadcast %c8_i32_7 : i32 to vector<8x1xi32>
    %18 = arith.subi %9, %17 : vector<8x1xi32>
    %19 = arith.select %16, %18, %9 : vector<8x1xi1>, vector<8x1xi32>
    %c0_8 = arith.constant 0 : index
    %c0_9 = arith.constant 0 : index
    %20 = vector.load %arg4[%c0_8, %c0_9] : memref<1x16xi32, #tpu.memory_space<vmem>>, vector<1x16xi32>
    %c0_10 = arith.constant 0 : index
    %c0_11 = arith.constant 0 : index
    %21 = vector.load %arg5[%c0_10, %c0_11] : memref<8x1xi32, #tpu.memory_space<vmem>>, vector<8x1xi32>
    %22 = vector.broadcast %19 : vector<8x1xi32> to vector<8x16xi32>
    %23 = vector.broadcast %14 : vector<1x16xi32> to vector<8x16xi32>
    %24 = arith.cmpi eq, %22, %23 : vector<8x16xi32>
    %25 = vector.broadcast %9 : vector<8x1xi32> to vector<8x16xi32>
    %26 = vector.broadcast %6 : vector<1x16xi32> to vector<8x16xi32>
    %27 = arith.cmpi eq, %25, %26 : vector<8x16xi32>
    %28 = vector.broadcast %21 : vector<8x1xi32> to vector<8x16xi32>
    %29 = vector.broadcast %20 : vector<1x16xi32> to vector<8x16xi32>
    %30 = arith.cmpi eq, %28, %29 : vector<8x16xi32>
    %cst_12 = arith.constant dense<true> : vector<8x16xi1>
    %31 = arith.xori %24, %cst_12 : vector<8x16xi1>
    %32 = arith.andi %30, %31 : vector<8x16xi1>
    %cst_13 = arith.constant dense<true> : vector<8x16xi1>
    %33 = arith.xori %27, %cst_13 : vector<8x16xi1>
    %cst_14 = arith.constant dense<true> : vector<8x16xi1>
    %34 = arith.xori %32, %cst_14 : vector<8x16xi1>
    %35 = arith.andi %33, %34 : vector<8x16xi1>
    %cst_15 = arith.constant dense<0xFF800000> : vector<8xf32>
    %36 = vector.multi_reduction <maximumf>, %5, %cst_15 [1] : vector<8x16xf32> to vector<8xf32>
    %37 = vector.shape_cast %36 : vector<8xf32> to vector<8x1xf32>
    %38 = vector.broadcast %37 : vector<8x1xf32> to vector<8x16xf32>
    %39 = arith.subf %5, %38 : vector<8x16xf32>
    %40 = math.exp %39 : vector<8x16xf32>
    %cst_16 = arith.constant 0.000000e+00 : f32
    %41 = vector.broadcast %cst_16 : f32 to vector<8x16xf32>
    %42 = arith.select %35, %40, %41 : vector<8x16xi1>, vector<8x16xf32>
    %cst_17 = arith.constant dense<0.000000e+00> : vector<8xf32>
    %43 = vector.multi_reduction <add>, %42, %cst_17 [1] : vector<8x16xf32> to vector<8xf32>
    %44 = vector.shape_cast %43 : vector<8xf32> to vector<8x1xf32>
    %45 = arith.extf %1 : vector<8x128xbf16> to vector<8x128xf32>
    %c0_18 = arith.constant 0 : index
    %c0_19 = arith.constant 0 : index
    %46 = vector.load %arg2[%c0_18, %c0_19] : memref<8x128xbf16, #tpu.memory_space<vmem>>, vector<8x128xbf16>
    %47 = arith.extf %46 : vector<8x128xbf16> to vector<8x128xf32>
    %48 = arith.mulf %45, %47 : vector<8x128xf32>
    %cst_20 = arith.constant dense<0.000000e+00> : vector<8xf32>
    %49 = vector.multi_reduction <add>, %48, %cst_20 [1] : vector<8x128xf32> to vector<8xf32>
    %50 = vector.shape_cast %49 : vector<8xf32> to vector<8x1xf32>
    %cst_21 = arith.constant 2.000000e+00 : f32
    %51 = vector.broadcast %cst_21 : f32 to vector<8x1xf32>
    %52 = arith.mulf %50, %51 : vector<8x1xf32>
    %53 = arith.subf %52, %37 : vector<8x1xf32>
    %54 = math.log %44 : vector<8x1xf32>
    %55 = arith.subf %53, %54 : vector<8x1xf32>
    %cst_22 = arith.constant 0.000000e+00 : f32
    %56 = vector.broadcast %cst_22 : f32 to vector<8x1xf32>
    %57 = arith.subf %56, %55 : vector<8x1xf32>
    %c0_23 = arith.constant 0 : index
    %c0_24 = arith.constant 0 : index
    %58 = vector.load %arg6[%c0_23, %c0_24] : memref<8x1xf32, #tpu.memory_space<vmem>>, vector<8x1xf32>
    tpu.vector_store %arg6[%c0_23, %c0_24], %57 {strides = array<i32>} : memref<8x1xf32, #tpu.memory_space<vmem>>, vector<8x1xf32>,
    return
  }
  func.func @transform_0(%arg0: i32) -> (i32, i32) {
    %c0_i32 = arith.constant 0 : i32
    %c0_i32_0 = arith.constant 0 : i32
    return %arg0, %c0_i32 : i32, i32
  }
  func.func @transform_1(%arg0: i32) -> (i32, i32) {
    %c1_i32 = arith.constant 1 : i32
    %0 = arith.addi %arg0, %c1_i32 : i32
    %c2_i32 = arith.constant 2 : i32
    %c0_i32 = arith.constant 0 : i32
    %1 = arith.cmpi eq, %c2_i32, %c0_i32 : i32
    %c1_i32_0 = arith.constant 1 : i32
    %2 = arith.select %1, %c1_i32_0, %c2_i32 : i32
    %3 = arith.remsi %0, %2 : i32
    %c0_i32_1 = arith.constant 0 : i32
    %4 = arith.cmpi ne, %3, %c0_i32_1 : i32
    %c0_i32_2 = arith.constant 0 : i32
    %5 = arith.cmpi slt, %3, %c0_i32_2 : i32
    %c0_i32_3 = arith.constant 0 : i32
    %6 = arith.cmpi slt, %2, %c0_i32_3 : i32
    %7 = arith.xori %5, %6 : i1
    %8 = arith.andi %7, %4 : i1
    %9 = arith.addi %3, %2 : i32
    %10 = arith.select %8, %9, %3 : i32
    %c0_i32_4 = arith.constant 0 : i32
    %c0_i32_5 = arith.constant 0 : i32
    return %10, %c0_i32_4 : i32, i32
  }
  func.func @transform_2(%arg0: i32) -> (i32, i32) {
    %c0_i32 = arith.constant 0 : i32
    %c0_i32_0 = arith.constant 0 : i32
    %c0_i32_1 = arith.constant 0 : i32
    return %c0_i32, %c0_i32_0 : i32, i32
  }
  func.func @transform_3(%arg0: i32) -> (i32, i32) {
    %c0_i32 = arith.constant 0 : i32
    %c0_i32_0 = arith.constant 0 : i32
    %c0_i32_1 = arith.constant 0 : i32
    return %c0_i32, %c0_i32_0 : i32, i32
  }
  func.func @transform_4(%arg0: i32) -> (i32, i32) {
    %c0_i32 = arith.constant 0 : i32
    %c0_i32_0 = arith.constant 0 : i32
    return %arg0, %c0_i32 : i32, i32
  }
  func.func @transform_5(%arg0: i32) -> (i32, i32) {
    %c0_i32 = arith.constant 0 : i32
    %c0_i32_0 = arith.constant 0 : i32
    return %arg0, %c0_i32 : i32, i32
  }
}

</mosaic_0001>

<llo_original>
// kernel: tpu_custom_call.1
$region0: #{tpu_custom_call.1}
  #allocation0 [shape = 'u32[]', space=smem, size = 0x4, offset = 0x4, fixed_abs, tag = 'smem constant byte address 0x4 - core index']
  #allocation1 [shape = 'u32[144,128]{1,0:T(1,128)}', space=vmem, size = 0x12000, scoped, tag = 'internal scratch']
  %s0 = inlined_call_operand.vmem [shape: bf16[16,128], index: 0, kind: input, shape index: {}]
  %s1 = inlined_call_operand.vmem [shape: bf16[16,128], index: 1, kind: input, shape index: {}]
  %s2 = inlined_call_operand.vmem [shape: bf16[128,16], index: 2, kind: input, shape index: {}]
  %s3 = inlined_call_operand.vmem [shape: s32[1,16], index: 3, kind: input, shape index: {}]
  %s4 = inlined_call_operand.vmem [shape: s32[16,1], index: 4, kind: input, shape index: {}]
  %s5 = inlined_call_operand.vmem [shape: f32[16,1], index: 5, kind: output, shape index: {}]
  %s6 = sld [smem:[#allocation0]]
  $region53: #{tpu_custom_call.1} parent=0
    _
  %s8 = ssub.s32 1, %s6
  %s9 = scalar_select 0, %s8, %s6
  loop: start=0, step=1, limit=4
  $region2: #{tpu_custom_call.1} parent=0 // loop_pre_header
    _
  $region3: #{tpu_custom_call.1} parent=0 // loop_header
    %s11 = sphi 0, %s15
    %p12 = scmp.ge.s32.totalorder %s11, 4
    %s21 = sphi 0, %s23
    %s24 = sphi 0, %s21
    %s25 = sphi 0, %s24
    %s41 = sphi 0, %s25
    %s73 = sphi 0, %s75
    %s76 = sphi 0, %s73
    %s77 = sphi 0, %s76
    %s93 = sphi 0, %s77
    %s97 = sphi 0, %s97
    %s99 = sphi 0, %s97
    %s100 = sphi 0, %s99
    %s114 = sphi 0, %s100
    %s118 = sphi 0, %s118
    %s120 = sphi 0, %s118
    %s121 = sphi 0, %s120
    %s135 = sphi 0, %s121
    %s141 = sphi 0, %s143
    %s144 = sphi 0, %s141
    %s145 = sphi 0, %s144
    %s161 = sphi 0, %s145
    %s167 = sphi 0, %s169
    %s170 = sphi 0, %s167
    %s171 = sphi 0, %s170
    %s187 = sphi 0, %s171
  $region4: #{tpu_custom_call.1} parent=0 // loop_header_branch
    %14 = sbr.rel (%p12) target = $region8
  $region5: #{tpu_custom_call.1} parent=0 // loop_body
    %s16 = ssub.s32 %s11, 1
    %s17 = ssub.s32 %s11, 2
    %s18 = sadd.s32 %s11, 1
    %s19 = ssub.s32 %s11, %s18
    %p20 = scmp.eq.s32.totalorder %s19, 0
    %s22 = sadd.s32 %s21, 1
    %s23 = scalar_select %p20, %s21, %s22
    %p26 = pneg %p20
    %p27 = scmp.eq.s32.totalorder %s11, 1
    %p28 = por %p26, %p27
    %p29 = scmp.ne.s32.totalorder %s21, %s24
    %p30 = scmp.eq.s32.totalorder %s11, 0
    %p31 = por %p29, %p30
    %p32 = scmp.ne.s32.totalorder %s21, %s24
    %p33 = scmp.eq.s32.totalorder %s16, 1
    %p34 = por %p32, %p33
    %p35 = scmp.ne.s32.totalorder %s24, %s25
    %p36 = scmp.eq.s32.totalorder %s16, 0
    %p37 = por %p35, %p36
    %p38 = scmp.ne.s32.totalorder %s24, %s25
    %p39 = scmp.eq.s32.totalorder %s17, 1
    %p40 = por %p38, %p39
    %p42 = scmp.ne.s32.totalorder %s25, %s41
    %p43 = scmp.eq.s32.totalorder %s17, 0
    %p44 = por %p42, %p43
    %s45 = sadd.s32 %s11, 1
    %p46 = scmp.lt.s32.totalorder %s45, 0
    %s47 = ssub.s32 0, %s45
    %s48 = scalar_select %p46, %s47, %s45
    %s49 = sand.u32 %s48, 1
    %s50 = ssub.s32 0, %s49
    %s51 = scalar_select %p46, %s50, %s49
    %p52 = scmp.ne.s32.totalorder %s51, 0
    %p53 = scmp.lt.s32.totalorder %s51, 0
    %p54 = pnand %p53, %p52
    %p55 = pneg %p54
    %s56 = sadd.s32 %s51, 2
    %s57 = scalar_select %p55, %s56, %s51
    %s58 = sadd.s32 %s18, 1
    %p59 = scmp.lt.s32.totalorder %s58, 0
    %s60 = ssub.s32 0, %s58
    %s61 = scalar_select %p59, %s60, %s58
    %s62 = sand.u32 %s61, 1
    %s63 = ssub.s32 0, %s62
    %s64 = scalar_select %p59, %s63, %s62
    %p65 = scmp.ne.s32.totalorder %s64, 0
    %p66 = scmp.lt.s32.totalorder %s64, 0
    %p67 = pnand %p66, %p65
    %p68 = pneg %p67
    %s69 = sadd.s32 %s64, 2
    %s70 = scalar_select %p68, %s69, %s64
    %s71 = ssub.s32 %s57, %s70
    %p72 = scmp.eq.s32.totalorder %s71, 0
    %s74 = sadd.s32 %s73, 1
    %s75 = scalar_select %p72, %s73, %s74
    %p78 = pneg %p72
    %p79 = scmp.eq.s32.totalorder %s11, 1
    %p80 = por %p78, %p79
    %p81 = scmp.ne.s32.totalorder %s73, %s76
    %p82 = scmp.eq.s32.totalorder %s11, 0
    %p83 = por %p81, %p82
    %p84 = scmp.ne.s32.totalorder %s73, %s76
    %p85 = scmp.eq.s32.totalorder %s16, 1
    %p86 = por %p84, %p85
    %p87 = scmp.ne.s32.totalorder %s76, %s77
    %p88 = scmp.eq.s32.totalorder %s16, 0
    %p89 = por %p87, %p88
    %p90 = scmp.ne.s32.totalorder %s76, %s77
    %p91 = scmp.eq.s32.totalorder %s17, 1
    %p92 = por %p90, %p91
    %p94 = scmp.ne.s32.totalorder %s77, %s93
    %p95 = scmp.eq.s32.totalorder %s17, 0
    %p96 = por %p94, %p95
    %s98 = sadd.s32 %s97, 1
    %p101 = scmp.eq.s32.totalorder %s11, 1
    %p102 = scmp.ne.s32.totalorder %s97, %s99
    %p103 = scmp.eq.s32.totalorder %s11, 0
    %p104 = por %p102, %p103
    %p105 = scmp.ne.s32.totalorder %s97, %s99
    %p106 = scmp.eq.s32.totalorder %s16, 1
    %p107 = por %p105, %p106
    %p108 = scmp.ne.s32.totalorder %s99, %s100
    %p109 = scmp.eq.s32.totalorder %s16, 0
    %p110 = por %p108, %p109
    %p111 = scmp.ne.s32.totalorder %s99, %s100
    %p112 = scmp.eq.s32.totalorder %s17, 1
    %p113 = por %p111, %p112
    %p115 = scmp.ne.s32.totalorder %s100, %s114
    %p116 = scmp.eq.s32.totalorder %s17, 0
    %p117 = por %p115, %p116
    %s119 = sadd.s32 %s118, 1
    %p122 = scmp.eq.s32.totalorder %s11, 1
    %p123 = scmp.ne.s32.totalorder %s118, %s120
    %p124 = scmp.eq.s32.totalorder %s11, 0
    %p125 = por %p123, %p124
    %p126 = scmp.ne.s32.totalorder %s118, %s120
    %p127 = scmp.eq.s32.totalorder %s16, 1
    %p128 = por %p126, %p127
    %p129 = scmp.ne.s32.totalorder %s120, %s121
    %p130 = scmp.eq.s32.totalorder %s16, 0
    %p131 = por %p129, %p130
    %p132 = scmp.ne.s32.totalorder %s120, %s121
    %p133 = scmp.eq.s32.totalorder %s17, 1
    %p134 = por %p132, %p133
    %p136 = scmp.ne.s32.totalorder %s121, %s135
    %p137 = scmp.eq.s32.totalorder %s17, 0
    %p138 = por %p136, %p137
    %s139 = ssub.s32 %s11, %s18
    %p140 = scmp.eq.s32.totalorder %s139, 0
    %s142 = sadd.s32 %s141, 1
    %s143 = scalar_select %p140, %s141, %s142
    %p146 = pneg %p140
    %p147 = scmp.eq.s32.totalorder %s11, 1
    %p148 = por %p146, %p147
    %p149 = scmp.ne.s32.totalorder %s141, %s144
    %p150 = scmp.eq.s32.totalorder %s11, 0
    %p151 = por %p149, %p150
    %p152 = scmp.ne.s32.totalorder %s141, %s144
    %p153 = scmp.eq.s32.totalorder %s16, 1
    %p154 = por %p152, %p153
    %p155 = scmp.ne.s32.totalorder %s144, %s145
    %p156 = scmp.eq.s32.totalorder %s16, 0
    %p157 = por %p155, %p156
    %p158 = scmp.ne.s32.totalorder %s144, %s145
    %p159 = scmp.eq.s32.totalorder %s17, 1
    %p160 = por %p158, %p159
    %p162 = scmp.ne.s32.totalorder %s145, %s161
    %p163 = scmp.eq.s32.totalorder %s17, 0
    %p164 = por %p162, %p163
    %s165 = ssub.s32 %s11, %s18
    %p166 = scmp.eq.s32.totalorder %s165, 0
    %s168 = sadd.s32 %s167, 1
    %s169 = scalar_select %p166, %s167, %s168
    %p172 = pneg %p166
    %p173 = scmp.eq.s32.totalorder %s11, 1
    %p174 = por %p172, %p173
    %p175 = scmp.ne.s32.totalorder %s167, %s170
    %p176 = scmp.eq.s32.totalorder %s11, 0
    %p177 = por %p175, %p176
    %p178 = scmp.ne.s32.totalorder %s167, %s170
    %p179 = scmp.eq.s32.totalorder %s16, 1
    %p180 = por %p178, %p179
    %p181 = scmp.ne.s32.totalorder %s170, %s171
    %p182 = scmp.eq.s32.totalorder %s16, 0
    %p183 = por %p181, %p182
    %p184 = scmp.ne.s32.totalorder %s170, %s171
    %p185 = scmp.eq.s32.totalorder %s17, 1
    %p186 = por %p184, %p185
    %p188 = scmp.ne.s32.totalorder %s171, %s187
    %p189 = scmp.eq.s32.totalorder %s17, 0
    %p190 = por %p188, %p189
    %p191 = scmp.le.s32.totalorder 1, %s11
    %p192 = scmp.lt.s32.totalorder %s11, 3
    %p193 = pnand %p191, %p192
    %p194 = pneg %p193
    // Predicated region
    $region9: #{tpu_custom_call.1} parent=5 // pred_check
      _
    $region10: #{tpu_custom_call.1} parent=5 // pred_check_branch
      %196 = sbr.rel (%p193) target = $region12
    $region11: #{tpu_custom_call.1} parent=5 // pred_region
      %s197 = ssub.s32 %s11, 1
      // Predicated region
      $region13: #{tpu_custom_call.1} parent=11 // pred_check
        %p198 = pneg %p110
      $region14: #{tpu_custom_call.1} parent=11 // pred_check_branch
        %200 = sbr.rel (%p198) target = $region16
      $region15: #{tpu_custom_call.1} parent=11 // pred_region
        _
      $region16: #{tpu_custom_call.1} parent=11 // pred_fallthru
        _
      // Predicated region
      $region17: #{tpu_custom_call.1} parent=11 // pred_check
        %p201 = pneg %p131
      $region18: #{tpu_custom_call.1} parent=11 // pred_check_branch
        %203 = sbr.rel (%p201) target = $region20
      $region19: #{tpu_custom_call.1} parent=11 // pred_region
        _
      $region20: #{tpu_custom_call.1} parent=11 // pred_fallthru
        _
    $region12: #{tpu_custom_call.1} parent=5 // pred_fallthru
      _
    %p204 = scmp.lt.s32.totalorder %s11, 2
    // Predicated region
    $region21: #{tpu_custom_call.1} parent=5 // pred_check
      %p205 = pneg %p204
    $region22: #{tpu_custom_call.1} parent=5 // pred_check_branch
      %207 = sbr.rel (%p205) target = $region24
    $region23: #{tpu_custom_call.1} parent=5 // pred_region
      // Predicated region
      $region25: #{tpu_custom_call.1} parent=23 // pred_check
        %p208 = pneg %p31
      $region26: #{tpu_custom_call.1} parent=23 // pred_check_branch
        %210 = sbr.rel (%p208) target = $region28
      $region27: #{tpu_custom_call.1} parent=23 // pred_region
        %p211 = scmp.lt.s32.totalorder %s11, 1
        %s212 = scalar_select %p211, %s11, 1
        %s213 = smul.addr %s212, 4
        %s214 = scalar_lea.vmem %s0, %s213
      $region28: #{tpu_custom_call.1} parent=23 // pred_fallthru
        _
      // Predicated region
      $region29: #{tpu_custom_call.1} parent=23 // pred_check
        %p215 = pneg %p83
      $region30: #{tpu_custom_call.1} parent=23 // pred_check_branch
        %217 = sbr.rel (%p215) target = $region32
      $region31: #{tpu_custom_call.1} parent=23 // pred_region
        %s218 = sadd.s32 %s11, 1
        %p219 = scmp.lt.s32.totalorder %s218, 0
        %s220 = ssub.s32 0, %s218
        %s221 = scalar_select %p219, %s220, %s218
        %s222 = sand.u32 %s221, 1
        %s223 = ssub.s32 0, %s222
        %s224 = scalar_select %p219, %s223, %s222
        %p225 = scmp.ne.s32.totalorder %s224, 0
        %p226 = scmp.lt.s32.totalorder %s224, 0
        %p227 = pnand %p226, %p225
        %p228 = pneg %p227
        %s229 = sadd.s32 %s224, 2
        %s230 = scalar_select %p228, %s229, %s224
        %p231 = scmp.lt.s32.totalorder %s230, 1
        %s232 = scalar_select %p231, %s230, 1
        %s233 = smul.addr %s232, 4
        %s234 = scalar_lea.vmem %s1, %s233
        %s235 = sadd.s32 %s11, 1
        %p236 = scmp.lt.s32.totalorder %s235, 0
        %s237 = ssub.s32 0, %s235
        %s238 = scalar_select %p236, %s237, %s235
        %s239 = sand.u32 %s238, 1
        %s240 = ssub.s32 0, %s239
        %s241 = scalar_select %p236, %s240, %s239
        %p242 = scmp.ne.s32.totalorder %s241, 0
        %p243 = scmp.lt.s32.totalorder %s241, 0
        %p244 = pnand %p243, %p242
        %p245 = pneg %p244
        %s246 = sadd.s32 %s241, 2
        %s247 = scalar_select %p245, %s246, %s241
      $region32: #{tpu_custom_call.1} parent=23 // pred_fallthru
        _
      // Predicated region
      $region33: #{tpu_custom_call.1} parent=23 // pred_check
        %p248 = pneg %p151
      $region34: #{tpu_custom_call.1} parent=23 // pred_check_branch
        %250 = sbr.rel (%p248) target = $region36
      $region35: #{tpu_custom_call.1} parent=23 // pred_region
        %p251 = scmp.lt.s32.totalorder %s11, 1
        %s252 = scalar_select %p251, %s11, 1
        %s253 = smul.addr %s252, 8
        %s254 = scalar_lea.vmem %s4, %s253
      $region36: #{tpu_custom_call.1} parent=23 // pred_fallthru
        _
    $region24: #{tpu_custom_call.1} parent=5 // pred_fallthru
      _
    %p255 = scmp.le.s32.totalorder 1, %s11
    %p256 = scmp.lt.s32.totalorder %s11, 3
    %p257 = pnand %p255, %p256
    %p258 = pneg %p257
    // Predicated region
    $region37: #{tpu_custom_call.1} parent=5 // pred_check
      _
    $region38: #{tpu_custom_call.1} parent=5 // pred_check_branch
      %260 = sbr.rel (%p257) target = $region40
    $region39: #{tpu_custom_call.1} parent=5 // pred_region
      %s261 = ssub.s32 %s11, 1
      %p262 = scmp.lt.s32.totalorder %s16, 1
      %s263 = scalar_select %p262, %s16, 1
      %s264 = smul.addr %s263, 4
      %s265 = scalar_lea.vmem %s0, %s264
      %p266 = pneg %p37
      %p267 = pneg %p34
      %s268 = sadd.s32 %s16, 1
      %p269 = scmp.lt.s32.totalorder %s268, 0
      %s270 = ssub.s32 0, %s268
      %s271 = scalar_select %p269, %s270, %s268
      %s272 = sand.u32 %s271, 1
      %s273 = ssub.s32 0, %s272
      %s274 = scalar_select %p269, %s273, %s272
      %p275 = scmp.ne.s32.totalorder %s274, 0
      %p276 = scmp.lt.s32.totalorder %s274, 0
      %p277 = pnand %p276, %p275
      %p278 = pneg %p277
      %s279 = sadd.s32 %s274, 2
      %s280 = scalar_select %p278, %s279, %s274
      %p281 = scmp.lt.s32.totalorder %s280, 1
      %s282 = scalar_select %p281, %s280, 1
      %s283 = smul.addr %s282, 4
      %s284 = scalar_lea.vmem %s1, %s283
      %p285 = pneg %p89
      %p286 = pneg %p86
      %p287 = pneg %p110
      %p288 = pneg %p107
      %p289 = pneg %p131
      %p290 = pneg %p128
      %p291 = scmp.lt.s32.totalorder %s16, 1
      %s292 = scalar_select %p291, %s16, 1
      %s293 = smul.addr %s292, 8
      %s294 = scalar_lea.vmem %s4, %s293
      %p295 = pneg %p157
      %p296 = pneg %p154
      %p297 = pneg %p183
      %p298 = pneg %p180
      %p299 = scmp.lt.s32.totalorder %s16, 1
      %s300 = scalar_select %p299, %s16, 1
      %s301 = smul.addr %s300, 8
      %s302 = scalar_lea.vmem %s5, %s301
      %p303 = scmp.lt.s32.totalorder %s16, 1
      %s304 = scalar_select %p303, %s16, 1
      %s305 = smul.addr %s304, 4
      %s306 = scalar_lea.vmem %s0, %s305
      %s307 = sadd.s32 %s16, 1
      %p308 = scmp.lt.s32.totalorder %s307, 0
      %s309 = ssub.s32 0, %s307
      %s310 = scalar_select %p308, %s309, %s307
      %s311 = sand.u32 %s310, 1
      %s312 = ssub.s32 0, %s311
      %s313 = scalar_select %p308, %s312, %s311
      %p314 = scmp.ne.s32.totalorder %s313, 0
      %p315 = scmp.lt.s32.totalorder %s313, 0
      %p316 = pnand %p315, %p314
      %p317 = pneg %p316
      %s318 = sadd.s32 %s313, 2
      %s319 = scalar_select %p317, %s318, %s313
      %p320 = scmp.lt.s32.totalorder %s319, 1
      %s321 = scalar_select %p320, %s319, 1
      %s322 = smul.addr %s321, 4
      %s323 = scalar_lea.vmem %s1, %s322
      %s324 = sadd.s32 %s16, 1
      %p325 = scmp.lt.s32.totalorder %s324, 0
      %s326 = ssub.s32 0, %s324
      %s327 = scalar_select %p325, %s326, %s324
      %s328 = sand.u32 %s327, 1
      %s329 = ssub.s32 0, %s328
      %s330 = scalar_select %p325, %s329, %s328
      %p331 = scmp.ne.s32.totalorder %s330, 0
      %p332 = scmp.lt.s32.totalorder %s330, 0
      %p333 = pnand %p332, %p331
      %p334 = pneg %p333
      %s335 = sadd.s32 %s330, 2
      %s336 = scalar_select %p334, %s335, %s330
      %p337 = scmp.lt.s32.totalorder %s16, 1
      %s338 = scalar_select %p337, %s16, 1
      %s339 = smul.addr %s338, 8
      %s340 = scalar_lea.vmem %s4, %s339
      %p341 = scmp.lt.s32.totalorder %s16, 1
      %s342 = scalar_select %p341, %s16, 1
      %s343 = smul.addr %s342, 8
      %s344 = scalar_lea.vmem %s5, %s343
      %s346 = smul.u32 %s16, 8
      %v347 = vld [vmem:[%s306] sm:$0xf]
      %v348 = vld [vmem:[%s2] sm:$0xf]
      %v349 = vld [vmem:[%s2 + $0x4] sm:$0xf]
      %v350 = vld [vmem:[%s2 + $0x8] sm:$0xf]
      %v351 = vld [vmem:[%s2 + $0xc] sm:$0xf]
      %v352 = vld [vmem:[%s2 + $0x10] sm:$0xf]
      %v353 = vld [vmem:[%s2 + $0x14] sm:$0xf]
      %v354 = vld [vmem:[%s2 + $0x18] sm:$0xf]
      %v355 = vld [vmem:[%s2 + $0x1c] sm:$0xf]
      %v356 = vld [vmem:[%s2 + $0x20] sm:$0xf]
      %v357 = vld [vmem:[%s2 + $0x24] sm:$0xf]
      %v358 = vld [vmem:[%s2 + $0x28] sm:$0xf]
      %v359 = vld [vmem:[%s2 + $0x2c] sm:$0xf]
      %v360 = vld [vmem:[%s2 + $0x30] sm:$0xf]
      %v361 = vld [vmem:[%s2 + $0x34] sm:$0xf]
      %v362 = vld [vmem:[%s2 + $0x38] sm:$0xf]
      %v363 = vld [vmem:[%s2 + $0x3c] sm:$0xf]
      %v380 = vunpack.c.l.b16 %v348
      %v381 = vunpack.c.l.b16 %v349
      %v382 = vunpack.c.l.b16 %v350
      %v383 = vunpack.c.l.b16 %v351
      %v384 = vunpack.c.l.b16 %v352
      %v385 = vunpack.c.l.b16 %v353
      %v386 = vunpack.c.l.b16 %v354
      %v387 = vunpack.c.l.b16 %v355
      %v388 = vunpack.c.l.b16 %v356
      %v389 = vunpack.c.l.b16 %v357
      %v390 = vunpack.c.l.b16 %v358
      %v391 = vunpack.c.l.b16 %v359
      %v392 = vunpack.c.l.b16 %v360
      %v393 = vunpack.c.l.b16 %v361
      %v394 = vunpack.c.l.b16 %v362
      %v395 = vunpack.c.l.b16 %v363
      %v396 = vpack.c.b16 %v381, %v380
      %v397 = vpack.c.b16 %v383, %v382
      %v398 = vpack.c.b16 %v385, %v384
      %v399 = vpack.c.b16 %v387, %v386
      %v400 = vpack.c.b16 %v389, %v388
      %v401 = vpack.c.b16 %v391, %v390
      %v402 = vpack.c.b16 %v393, %v392
      %v403 = vpack.c.b16 %v395, %v394
      %412 = vmatprep.subr.bf16.mxu0 0
      %413 = vmatpush1.bf16.msra.mxu0 %v396
      %414 = vmatprep.subr.bf16.mxu0 0
      %415 = vmatpush1.bf16.msra.mxu0 %v397
      %416 = vmatprep.subr.bf16.mxu0 0
      %417 = vmatpush1.bf16.msra.mxu0 %v398
      %418 = vmatprep.subr.bf16.mxu0 0
      %419 = vmatpush1.bf16.msra.mxu0 %v399
      %420 = vmatprep.subr.bf16.mxu0 0
      %421 = vmatpush1.bf16.msra.mxu0 %v400
      %422 = vmatprep.subr.bf16.mxu0 0
      %423 = vmatpush1.bf16.msra.mxu0 %v401
      %424 = vmatprep.subr.bf16.mxu0 0
      %425 = vmatpush1.bf16.msra.mxu0 %v402
      %426 = vmatprep.subr.bf16.mxu0 0
      %427 = vmatpush1.bf16.msra.mxu0 %v403
      %428 = vmatprep.subr.bf16.mxu0 0
      %429 = vmatpush1.bf16.msra.mxu0 0
      %430 = vmatprep.subr.bf16.mxu0 0
      %431 = vmatpush1.bf16.msra.mxu0 0
      %432 = vmatprep.subr.bf16.mxu0 0
      %433 = vmatpush1.bf16.msra.mxu0 0
      %434 = vmatprep.subr.bf16.mxu0 0
      %435 = vmatpush1.bf16.msra.mxu0 0
      %436 = vmatprep.subr.bf16.mxu0 0
      %437 = vmatpush1.bf16.msra.mxu0 0
      %438 = vmatprep.subr.bf16.mxu0 0
      %439 = vmatpush1.bf16.msra.mxu0 0
      %440 = vmatprep.subr.bf16.mxu0 0
      %441 = vmatpush1.bf16.msra.mxu0 0
      %442 = vmatprep.subr.bf16.mxu0 0
      %443 = vmatpush1.bf16.msra.mxu0 0
      %444 = vmatprep.mubr.bf16.mxu0 0
      %445 = vmatmul.mubr.bf16.gmra.mrb[0].mxu0 %v347
      %v446 = vpop.f32.mrb[0].mxu0
      %v447 = vadd.f32 0.0, %v446
      %v448 = vpop.f32.mrb[0].mxu0
      %v449 = vpop.f32.mrb[0].mxu0
      %v450 = vpop.f32.mrb[0].mxu0
      %451 = vdwg.mxu0
      %v452 = vmul.f32 %v447, 2.0
      %v453 = vlaneseq
      %v454 = vand.u32 %v453, 127
      %v455 = vlaneseq
      %v456 = vshrl.u32 %v455, 7
      %v457 = vstv %s346
      %v458 = vadd.s32 %v457, %v456
      %vm459 = vcmp.ge.s32.totalorder %v454, 8
      %v460 = vsub.s32 %v454, 8
      %v461 = vsel %vm459, %v460, %v454
      %vm462 = vcmp.ge.s32.totalorder %v458, 8
      %v463 = vsub.s32 %v458, 8
      %v464 = vsel %vm462, %v463, %v458
      %v465 = vld [vmem:[%s3] sm:$0x1]
      %v466 = vld [vmem:[%s340] sm:$0xff]
      %vm467 = vcmp.eq.s32.totalorder %v464, %v461
      %vm468 = vcmp.eq.s32.totalorder %v458, %v454
      %469 = vset.pattern.permute.xlu0 0
      %470 = vperm.xlu0 %469, %v466
      %v471 = vpop.permute.xlu0 %470
      %v472 = vlaneseq
      %v473 = vshrl.u32 %v472, 7
      %v474 = vsub.s32 0, %v473
      %v475 = vrot.slane %v465, %v474
      %vm476 = vcmp.eq.s32.totalorder %v471, %v475
      %vm477 = vmxor %vm467, 1
      %vm478 = vmand %vm476, %vm477
      %vm479 = vmxor %vm468, 1
      %vm480 = vmxor %vm478, 1
      %vm481 = vmand %vm479, %vm480
      %vm482 = vcmask 130048
      %v483 = vsel %vm482, %v452, -inf
      %484 = vmax.xlane.f32.xlu0 %v483
      %v485 = vpop.xlane.xlu0 %484
      %v486 = vsub.f32 %v452, %v485
      %v487 = vmul.f32 %v486, 1.442695
      %v488 = vpow.pop %v487
      %v489 = vsel %vm481, %v488, 0.0
      %v490 = vsel %vm482, %v489, 0.0
      %491 = vadd.xlane.f32.xlu0 %v490
      %v492 = vpop.xlane.xlu0 %491
      %v493 = vunpack.c.l.bf16 %v347
      %v494 = vld [vmem:[%s323] sm:$0xf]
      %v495 = vunpack.c.l.bf16 %v494
      %v496 = vmul.f32 %v493, %v495
      %497 = vadd.xlane.f32.xlu0 %v496
      %v498 = vpop.xlane.xlu0 %497
      %v499 = vmul.f32 %v498, 2.0
      %v500 = vsub.f32 %v499, %v485
      %v501 = vlog2.pop %v492
      %v502 = vmul.f32 %v501, 0.6931472
      %v503 = vsub.f32 %v500, %v502
      %v504 = vsub.f32 0.0, %v503
      %vm505 = vcmask 7168
      %506 = vst.msk [vmem:[%s344] sm:$0xff] %vm505, %v504
      %p507 = scmp.lt.s32.totalorder %s16, 1
      %s508 = scalar_select %p507, %s16, 1
      %s509 = smul.addr %s508, 8
      %s510 = scalar_lea.vmem %s5, %s509
      // Predicated region
      $region41: #{tpu_custom_call.1} parent=39 // pred_check
        %p511 = pneg %p180
      $region42: #{tpu_custom_call.1} parent=39 // pred_check_branch
        %513 = sbr.rel (%p511) target = $region44
      $region43: #{tpu_custom_call.1} parent=39 // pred_region
        _
      $region44: #{tpu_custom_call.1} parent=39 // pred_fallthru
        _
    $region40: #{tpu_custom_call.1} parent=5 // pred_fallthru
      _
    %p514 = scmp.le.s32.totalorder 2, %s11
    // Predicated region
    $region45: #{tpu_custom_call.1} parent=5 // pred_check
      %p515 = pneg %p514
    $region46: #{tpu_custom_call.1} parent=5 // pred_check_branch
      %517 = sbr.rel (%p515) target = $region48
    $region47: #{tpu_custom_call.1} parent=5 // pred_region
      %s518 = ssub.s32 %s11, 2
      // Predicated region
      $region49: #{tpu_custom_call.1} parent=47 // pred_check
        %p519 = pneg %p186
      $region50: #{tpu_custom_call.1} parent=47 // pred_check_branch
        %521 = sbr.rel (%p519) target = $region52
      $region51: #{tpu_custom_call.1} parent=47 // pred_region
        %p522 = scmp.lt.s32.totalorder %s17, 1
        %s523 = scalar_select %p522, %s17, 1
        %s524 = smul.addr %s523, 8
        %s525 = scalar_lea.vmem %s5, %s524
      $region52: #{tpu_custom_call.1} parent=47 // pred_fallthru
        _
    $region48: #{tpu_custom_call.1} parent=5 // pred_fallthru
      _
  $region6: #{tpu_custom_call.1} parent=0 // loop_footer
    %s15 = sadd.s32 1, %s11
  $region7: #{tpu_custom_call.1} parent=0 // loop_footer_branch
    %10 = sbr.rel target = $region3
  $region8: #{tpu_custom_call.1} parent=0 // loop_exit
    _

</llo_original>
